<compile_context>
chip_gen: v7x
topology: tpu7x:2x2x1
jax: 0.10.0
libtpu: 0.0.40
codegen_flags: <defaults>
</compile_context>

<pallas_src>
import functools

import jax
import jax.numpy as jnp
from jax.experimental import pallas as pl
from jax.experimental.pallas import tpu as pltpu


def _ffnn_kernel(x_ref, w1_ref, b1_ref, w2_ref, b2_ref, o_ref):
    # x_ref : (TB, I)  bf16      w1_ref: (I, H)  bf16      b1_ref: (1, H)  f32
    # w2_ref: (H, OP)  bf16 (class dim padded to OP; padded cols are zero)
    # b2_ref: (1, OP)  f32  (padded entries are -1e30 so softmax ignores them)
    x = x_ref[...]

    # linear1: (TB, I) @ (I, H) -> (TB, H); bf16 operands, f32 MXU accumulate.
    h = jnp.dot(x, w1_ref[...], preferred_element_type=jnp.float32)
    h = jax.nn.sigmoid(h + b1_ref[...])                      # f32 EUP logistic

    # linear2: (TB, H) @ (H, OP) -> (TB, OP); padded columns get 0 + (-1e30) bias.
    logits = jnp.dot(h.astype(jnp.bfloat16), w2_ref[...],
                     preferred_element_type=jnp.float32) + b2_ref[...]

    # Custom softmax.  The reference subtracts the GLOBAL max, but softmax over the last
    # dim is invariant to a per-row constant shift, so per-row max gives the identical
    # result while keeping batch rows independent (tileable) and numerically safer.
    row_max = jnp.max(logits, axis=-1, keepdims=True)
    e = jnp.exp(logits - row_max)                            # padded cols -> exactly 0
    row_sum = jnp.sum(e, axis=-1, keepdims=True)
    o_ref[...] = (e / row_sum).astype(o_ref.dtype)           # exact f32 divide


def _pick_block_batch(batch: int) -> int:
    """Largest batch tile (<= 512 rows) that divides B; multiple of 8 for sublane alignment."""
    if batch <= 512:
        return batch
    for tb in (512, 256, 128, 64, 32, 16, 8):
        if batch % tb == 0:
            return tb
    return batch  # irregular batch: fall back to a single block


@functools.partial(jax.jit, static_argnames=("block_batch",))
def ffnn_forward(x, w1, b1, w2, b2, *, block_batch=None):
    """x: (B, I) f32.  w1: (H, I), b1: (H,), w2: (O, H), b2: (O,)  (PyTorch nn.Linear layout)."""
    B, I = x.shape
    H, _ = w1.shape
    O, _ = w2.shape
    OP = ((O + 127) // 128) * 128  # lane-dense padded class dim (multiple of 128)

    tb = block_batch if block_batch is not None else _pick_block_batch(B)
    assert B % tb == 0 and (tb == B or tb % 8 == 0), "batch tile must divide B, multiple of 8"

    # One-time layout / dtype prep, amortized over all grid steps (fused under jit):
    x_bf = x.astype(jnp.bfloat16)
    w1t = w1.T.astype(jnp.bfloat16)                                   # (I, H)
    b1_r = b1.reshape(1, H).astype(jnp.float32)
    w2t = jnp.zeros((H, OP), jnp.bfloat16).at[:, :O].set(w2.T.astype(jnp.bfloat16))
    b2_r = jnp.full((1, OP), -1e30, jnp.float32).at[0, :O].set(b2.astype(jnp.float32))

    cost = pl.CostEstimate(
        flops=2 * B * (I * H + H * OP),
        transcendentals=B * (H + OP),
        bytes_accessed=(x_bf.size * 2 + w1t.size * 2 + w2t.size * 2
                        + b1_r.size * 4 + b2_r.size * 4 + B * OP * 4),
    )

    out = pl.pallas_call(
        _ffnn_kernel,
        out_shape=jax.ShapeDtypeStruct((B, OP), jnp.float32),
        grid=(B // tb,),
        in_specs=[
            pl.BlockSpec((tb, I), lambda i: (i, 0)),    # x: streamed per batch tile
            pl.BlockSpec((I, H), lambda i: (0, 0)),     # w1^T: VMEM-resident across the grid
            pl.BlockSpec((1, H), lambda i: (0, 0)),     # b1: resident
            pl.BlockSpec((H, OP), lambda i: (0, 0)),    # w2^T (padded): resident
            pl.BlockSpec((1, OP), lambda i: (0, 0)),    # b2 (padded): resident
        ],
        out_specs=pl.BlockSpec((tb, OP), lambda i: (i, 0)),
        compiler_params=pltpu.CompilerParams(dimension_semantics=("parallel",)),
        cost_estimate=cost,
    )(x_bf, w1t, b1_r, w2t, b2_r)

    return out[:, :O]  # drop padded classes (fused slice under jit)


def _torch_linear_init(key, out_features, in_features):
    """Deterministic init mimicking nn.Linear: U(-1/sqrt(in), 1/sqrt(in))."""
    kw, kb = jax.random.split(key)
    bound = 1.0 / jnp.sqrt(jnp.float32(in_features))
    w = jax.random.uniform(kw, (out_features, in_features), jnp.float32, -bound, bound)
    b = jax.random.uniform(kb, (out_features,), jnp.float32, -bound, bound)
    return w, b


def _reference(x, w1, b1, w2, b2):
    h = jax.nn.sigmoid(x @ w1.T + b1)
    logits = h @ w2.T + b2
    # Matches the PyTorch module: global max subtraction, per-row sum.
    e = jnp.exp(logits - jnp.max(logits))
    return e / jnp.sum(e, axis=-1, keepdims=True)


if __name__ == "__main__":
    # Small shapes consistent with FFNN(input_size, hidden_size, output_size).
    batch, input_size, hidden_size, output_size = 16, 16, 32, 8

    key = jax.random.PRNGKey(0)
    k_x, k_l1, k_l2 = jax.random.split(key, 3)

    x = jax.random.normal(k_x, (batch, input_size), jnp.float32)
    w1, b1 = _torch_linear_init(k_l1, hidden_size, input_size)
    w2, b2 = _torch_linear_init(k_l2, output_size, hidden_size)

    # Single grid step at this toy size (nothing to pipeline; avoids per-step overhead).
    out = ffnn_forward(x, w1, b1, w2, b2)
    jax.block_until_ready(out)

    ref = _reference(x, w1, b1, w2, b2)
    assert out.shape == (batch, output_size)
    # Tolerance accounts for bf16 MXU operands (f32 reference); accumulation/softmax are f32.
    assert jnp.allclose(out, ref, atol=3e-2, rtol=3e-2), "mismatch vs reference"
    # Exact f32 normalization: softmax rows must sum to ~1.
    assert jnp.allclose(jnp.sum(out, axis=-1), 1.0, atol=1e-4), "rows do not sum to 1"

    print("KERNEL_OK")
</pallas_src>

<mosaic_0001>
module attributes {stable_mosaic.version = 11 : i64} {
  func.func @_ffnn_kernel(%arg0: i32, %arg1: memref<16x16xbf16, #tpu.memory_space<vmem>>, %arg2: memref<16x32xbf16, #tpu.memory_space<vmem>>, %arg3: memref<1x32xf32, #tpu.memory_space<vmem>>, %arg4: memref<32x128xbf16, #tpu.memory_space<vmem>>, %arg5: memref<1x128xf32, #tpu.memory_space<vmem>>, %arg6: memref<16x128xf32, #tpu.memory_space<vmem>>) attributes {dimension_semantics = [#tpu.dimension_semantics<parallel>], iteration_bounds = array<i64: 1>, scalar_prefetch = 0 : i64, scratch_operands = 0 : i64, tpu.core_type = #tpu.core_type<tc>, window_params = [{transform_indices = @transform_0, window_bounds = array<i64: 16, 16>}, {pipeline_mode = #tpu.pipeline_mode<synchronous>, transform_indices = @transform_1, window_bounds = array<i64: 16, 32>}, {pipeline_mode = #tpu.pipeline_mode<synchronous>, transform_indices = @transform_2, window_bounds = array<i64: 1, 32>}, {pipeline_mode = #tpu.pipeline_mode<synchronous>, transform_indices = @transform_3, window_bounds = array<i64: 32, 128>}, {pipeline_mode = #tpu.pipeline_mode<synchronous>, transform_indices = @transform_4, window_bounds = array<i64: 1, 128>}, {transform_indices = @transform_5, window_bounds = array<i64: 16, 128>}]} {
    %c0 = arith.constant 0 : index
    %c0_0 = arith.constant 0 : index
    %0 = vector.load %arg1[%c0, %c0_0] : memref<16x16xbf16, #tpu.memory_space<vmem>>, vector<16x16xbf16>
    %c0_1 = arith.constant 0 : index
    %c0_2 = arith.constant 0 : index
    %1 = vector.load %arg2[%c0_1, %c0_2] : memref<16x32xbf16, #tpu.memory_space<vmem>>, vector<16x32xbf16>
    %cst = arith.constant dense<0.000000e+00> : vector<16x32xf32>
    %2 = tpu.matmul %0, %1, %cst {dimension_numbers = #tpu.dot_dimension_numbers<[1], [0], [0], [1], [0, 0, 1, 1], [], []>} : vector<16x16xbf16>, vector<16x32xbf16>, vector<16x32xf32> -> vector<16x32xf32>
    %c0_3 = arith.constant 0 : index
    %c0_4 = arith.constant 0 : index
    %3 = vector.load %arg3[%c0_3, %c0_4] : memref<1x32xf32, #tpu.memory_space<vmem>>, vector<1x32xf32>
    %4 = vector.broadcast %3 : vector<1x32xf32> to vector<16x32xf32>
    %5 = arith.addf %2, %4 : vector<16x32xf32>
    %6 = arith.negf %5 : vector<16x32xf32>
    %7 = math.exp %6 : vector<16x32xf32>
    %cst_5 = arith.constant 1.000000e+00 : f32
    %8 = vector.broadcast %cst_5 : f32 to vector<16x32xf32>
    %9 = arith.addf %8, %7 : vector<16x32xf32>
    %10 = arith.divf %8, %9 : vector<16x32xf32>
    %11 = arith.truncf %10 : vector<16x32xf32> to vector<16x32xbf16>
    %c0_6 = arith.constant 0 : index
    %c0_7 = arith.constant 0 : index
    %12 = vector.load %arg4[%c0_6, %c0_7] : memref<32x128xbf16, #tpu.memory_space<vmem>>, vector<32x128xbf16>
    %cst_8 = arith.constant dense<0.000000e+00> : vector<16x128xf32>
    %13 = tpu.matmul %11, %12, %cst_8 {dimension_numbers = #tpu.dot_dimension_numbers<[1], [0], [0], [1], [0, 0, 1, 1], [], []>} : vector<16x32xbf16>, vector<32x128xbf16>, vector<16x128xf32> -> vector<16x128xf32>
    %c0_9 = arith.constant 0 : index
    %c0_10 = arith.constant 0 : index
    %14 = vector.load %arg5[%c0_9, %c0_10] : memref<1x128xf32, #tpu.memory_space<vmem>>, vector<1x128xf32>
    %15 = vector.broadcast %14 : vector<1x128xf32> to vector<16x128xf32>
    %16 = arith.addf %13, %15 : vector<16x128xf32>
    %cst_11 = arith.constant dense<0xFF800000> : vector<16xf32>
    %17 = vector.multi_reduction <maximumf>, %16, %cst_11 [1] : vector<16x128xf32> to vector<16xf32>
    %18 = vector.shape_cast %17 : vector<16xf32> to vector<16x1xf32>
    %19 = vector.broadcast %18 : vector<16x1xf32> to vector<16x128xf32>
    %20 = arith.subf %16, %19 : vector<16x128xf32>
    %21 = math.exp %20 : vector<16x128xf32>
    %cst_12 = arith.constant dense<0.000000e+00> : vector<16xf32>
    %22 = vector.multi_reduction <add>, %21, %cst_12 [1] : vector<16x128xf32> to vector<16xf32>
    %23 = vector.shape_cast %22 : vector<16xf32> to vector<16x1xf32>
    %24 = vector.broadcast %23 : vector<16x1xf32> to vector<16x128xf32>
    %25 = arith.divf %21, %24 : vector<16x128xf32>
    %c0_13 = arith.constant 0 : index
    %c0_14 = arith.constant 0 : index
    %26 = vector.load %arg6[%c0_13, %c0_14] : memref<16x128xf32, #tpu.memory_space<vmem>>, vector<16x128xf32>
    tpu.vector_store %arg6[%c0_13, %c0_14], %25 {strides = array<i32>} : memref<16x128xf32, #tpu.memory_space<vmem>>, vector<16x128xf32>,
    return
  }
  func.func @transform_0(%arg0: i32) -> (i32, i32) {
    %c0_i32 = arith.constant 0 : i32
    %c0_i32_0 = arith.constant 0 : i32
    return %arg0, %c0_i32 : i32, i32
  }
  func.func @transform_1(%arg0: i32) -> (i32, i32) {
    %c0_i32 = arith.constant 0 : i32
    %c0_i32_0 = arith.constant 0 : i32
    %c0_i32_1 = arith.constant 0 : i32
    return %c0_i32, %c0_i32_0 : i32, i32
  }
  func.func @transform_2(%arg0: i32) -> (i32, i32) {
    %c0_i32 = arith.constant 0 : i32
    %c0_i32_0 = arith.constant 0 : i32
    %c0_i32_1 = arith.constant 0 : i32
    return %c0_i32, %c0_i32_0 : i32, i32
  }
  func.func @transform_3(%arg0: i32) -> (i32, i32) {
    %c0_i32 = arith.constant 0 : i32
    %c0_i32_0 = arith.constant 0 : i32
    %c0_i32_1 = arith.constant 0 : i32
    return %c0_i32, %c0_i32_0 : i32, i32
  }
  func.func @transform_4(%arg0: i32) -> (i32, i32) {
    %c0_i32 = arith.constant 0 : i32
    %c0_i32_0 = arith.constant 0 : i32
    %c0_i32_1 = arith.constant 0 : i32
    return %c0_i32, %c0_i32_0 : i32, i32
  }
  func.func @transform_5(%arg0: i32) -> (i32, i32) {
    %c0_i32 = arith.constant 0 : i32
    %c0_i32_0 = arith.constant 0 : i32
    return %arg0, %c0_i32 : i32, i32
  }
}

</mosaic_0001>

<llo_original>
// kernel: ffnn_forward.1
$region0: #{ffnn_forward.1}
  #allocation0 [shape = 'u32[]', space=smem, size = 0x4, offset = 0x4, fixed_abs, tag = 'smem constant byte address 0x4 - core index']
  #allocation1 [shape = 'u32[144,128]{1,0:T(1,128)}', space=vmem, size = 0x12000, scoped, tag = 'internal scratch']
  %s0 = inlined_call_operand.vmem [shape: bf16[16,16], index: 0, kind: input, shape index: {}]
  %s1 = inlined_call_operand.vmem [shape: bf16[16,32], index: 1, kind: input, shape index: {}]
  %s2 = inlined_call_operand.vmem [shape: f32[1,32], index: 2, kind: input, shape index: {}]
  %s3 = inlined_call_operand.vmem [shape: bf16[32,128], index: 3, kind: input, shape index: {}]
  %s4 = inlined_call_operand.vmem [shape: f32[1,128], index: 4, kind: input, shape index: {}]
  %s5 = inlined_call_operand.vmem [shape: f32[16,128], index: 5, kind: output, shape index: {}]
  %s6 = sld [smem:[#allocation0]]
  $region30: #{ffnn_forward.1} parent=0
    _
  %s8 = ssub.s32 1, %s6
  %s9 = scalar_select 0, %s8, %s6
  // Predicated region
  $region2: #{ffnn_forward.1} parent=0 // pred_check
    _
  $region3: #{ffnn_forward.1} parent=0 // pred_check_branch
    %11 = sbr.rel (0) target = $region5
  $region4: #{ffnn_forward.1} parent=0 // pred_region
    _
  $region5: #{ffnn_forward.1} parent=0 // pred_fallthru
    _
  // Predicated region
  $region6: #{ffnn_forward.1} parent=0 // pred_check
    _
  $region7: #{ffnn_forward.1} parent=0 // pred_check_branch
    %13 = sbr.rel (0) target = $region9
  $region8: #{ffnn_forward.1} parent=0 // pred_region
    _
  $region9: #{ffnn_forward.1} parent=0 // pred_fallthru
    _
  // Predicated region
  $region10: #{ffnn_forward.1} parent=0 // pred_check
    _
  $region11: #{ffnn_forward.1} parent=0 // pred_check_branch
    %15 = sbr.rel (0) target = $region13
  $region12: #{ffnn_forward.1} parent=0 // pred_region
    _
  $region13: #{ffnn_forward.1} parent=0 // pred_fallthru
    _
  // Predicated region
  $region14: #{ffnn_forward.1} parent=0 // pred_check
    _
  $region15: #{ffnn_forward.1} parent=0 // pred_check_branch
    %17 = sbr.rel (0) target = $region17
  $region16: #{ffnn_forward.1} parent=0 // pred_region
    _
  $region17: #{ffnn_forward.1} parent=0 // pred_fallthru
    _
  // Predicated region
  $region18: #{ffnn_forward.1} parent=0 // pred_check
    _
  $region19: #{ffnn_forward.1} parent=0 // pred_check_branch
    %19 = sbr.rel (0) target = $region21
  $region20: #{ffnn_forward.1} parent=0 // pred_region
    _
  $region21: #{ffnn_forward.1} parent=0 // pred_fallthru
    _
  %v21 = vld [vmem:[%s0] sm:$0xf]
  %v22 = vld [vmem:[%s0 + $0x4] sm:$0xf]
  %v23 = vld [vmem:[%s1] sm:$0xf]
  %v24 = vld [vmem:[%s1 + $0x4] sm:$0xf]
  %v25 = vld [vmem:[%s2] sm:$0x1]
  %v27 = vlaneseq
  %v28 = vshrl.u32 %v27, 7
  %v29 = vsub.s32 0, %v28
  %v30 = vrot.slane %v25, %v29
  %v34 = vunpack.c.l.b16 %v21
  %v35 = vunpack.c.l.b16 %v22
  %v36 = vpack.c.b16 %v35, %v34
  %v39 = vunpack.c.l.b16 %v23
  %v40 = vunpack.c.l.b16 %v24
  %v41 = vpack.c.b16 %v40, %v39
  %vm43 = vcmask 130048
  %v45 = vsel %vm43, %v36, 0
  %47 = vmatprep.subr.bf16.mxu0 0
  %48 = vmatpush1.bf16.msra.mxu0 %v41
  %49 = vmatprep.subr.bf16.mxu0 0
  %50 = vmatpush1.bf16.msra.mxu0 0
  %51 = vmatprep.subr.bf16.mxu0 0
  %52 = vmatpush1.bf16.msra.mxu0 0
  %53 = vmatprep.subr.bf16.mxu0 0
  %54 = vmatpush1.bf16.msra.mxu0 0
  %55 = vmatprep.subr.bf16.mxu0 0
  %56 = vmatpush1.bf16.msra.mxu0 0
  %57 = vmatprep.subr.bf16.mxu0 0
  %58 = vmatpush1.bf16.msra.mxu0 0
  %59 = vmatprep.subr.bf16.mxu0 0
  %60 = vmatpush1.bf16.msra.mxu0 0
  %61 = vmatprep.subr.bf16.mxu0 0
  %62 = vmatpush1.bf16.msra.mxu0 0
  %63 = vmatprep.subr.bf16.mxu0 0
  %64 = vmatpush1.bf16.msra.mxu0 0
  %65 = vmatprep.subr.bf16.mxu0 0
  %66 = vmatpush1.bf16.msra.mxu0 0
  %67 = vmatprep.subr.bf16.mxu0 0
  %68 = vmatpush1.bf16.msra.mxu0 0
  %69 = vmatprep.subr.bf16.mxu0 0
  %70 = vmatpush1.bf16.msra.mxu0 0
  %71 = vmatprep.subr.bf16.mxu0 0
  %72 = vmatpush1.bf16.msra.mxu0 0
  %73 = vmatprep.subr.bf16.mxu0 0
  %74 = vmatpush1.bf16.msra.mxu0 0
  %75 = vmatprep.subr.bf16.mxu0 0
  %76 = vmatpush1.bf16.msra.mxu0 0
  %77 = vmatprep.subr.bf16.mxu0 0
  %78 = vmatpush1.bf16.msra.mxu0 0
  %79 = vmatprep.mubr.bf16.mxu0 0
  %80 = vmatmul.mubr.bf16.gmra.mrb[0].mxu0 %v45
  %v81 = vpop.f32.mrb[0].mxu0
  %v82 = vadd.f32 %v30, %v81
  %v83 = vpop.f32.mrb[0].mxu0
  %v84 = vpop.f32.mrb[0].mxu0
  %v85 = vadd.f32 %v30, %v84
  %v86 = vpop.f32.mrb[0].mxu0
  %87 = vdwg.mxu0
  %v88 = vxor.u32 %v82, 2147483648
  %v89 = vxor.u32 %v85, 2147483648
  %v90 = vmul.f32 %v88, 1.442695
  %v91 = vpow.pop %v90
  %v92 = vmul.f32 %v89, 1.442695
  %v93 = vpow.pop %v92
  %v94 = vadd.f32 %v91, 1.0
  %v95 = vadd.f32 %v93, 1.0
  %v96 = vrcp.pop %v94
  %v97 = vmul.f32 1.0, %v96
  %v98 = vrcp.pop %v95
  %v99 = vmul.f32 1.0, %v98
  %v100 = vpack.c.bf16 %v99, %v97
  %v101 = vld [vmem:[%s3] sm:$0xf]
  %v102 = vld [vmem:[%s3 + $0x4] sm:$0xf]
  %v103 = vld [vmem:[%s3 + $0x8] sm:$0xf]
  %v104 = vld [vmem:[%s3 + $0xc] sm:$0xf]
  %v105 = vld [vmem:[%s4] sm:$0x1]
  %v107 = vlaneseq
  %v108 = vshrl.u32 %v107, 7
  %v109 = vsub.s32 0, %v108
  %v110 = vrot.slane %v105, %v109
  %v116 = vunpack.c.l.b16 %v101
  %v117 = vunpack.c.l.b16 %v102
  %v118 = vunpack.c.l.b16 %v103
  %v119 = vunpack.c.l.b16 %v104
  %v120 = vpack.c.b16 %v117, %v116
  %v121 = vpack.c.b16 %v119, %v118
  %vm124 = vcmask 261120
  %v126 = vsel %vm124, %v100, 0
  %128 = vmatprep.subr.bf16.mxu0 0
  %129 = vmatpush1.bf16.msra.mxu0 %v120
  %130 = vmatprep.subr.bf16.mxu0 0
  %131 = vmatpush1.bf16.msra.mxu0 %v121
  %132 = vmatprep.subr.bf16.mxu0 0
  %133 = vmatpush1.bf16.msra.mxu0 0
  %134 = vmatprep.subr.bf16.mxu0 0
  %135 = vmatpush1.bf16.msra.mxu0 0
  %136 = vmatprep.subr.bf16.mxu0 0
  %137 = vmatpush1.bf16.msra.mxu0 0
  %138 = vmatprep.subr.bf16.mxu0 0
  %139 = vmatpush1.bf16.msra.mxu0 0
  %140 = vmatprep.subr.bf16.mxu0 0
  %141 = vmatpush1.bf16.msra.mxu0 0
  %142 = vmatprep.subr.bf16.mxu0 0
  %143 = vmatpush1.bf16.msra.mxu0 0
  %144 = vmatprep.subr.bf16.mxu0 0
  %145 = vmatpush1.bf16.msra.mxu0 0
  %146 = vmatprep.subr.bf16.mxu0 0
  %147 = vmatpush1.bf16.msra.mxu0 0
  %148 = vmatprep.subr.bf16.mxu0 0
  %149 = vmatpush1.bf16.msra.mxu0 0
  %150 = vmatprep.subr.bf16.mxu0 0
  %151 = vmatpush1.bf16.msra.mxu0 0
  %152 = vmatprep.subr.bf16.mxu0 0
  %153 = vmatpush1.bf16.msra.mxu0 0
  %154 = vmatprep.subr.bf16.mxu0 0
  %155 = vmatpush1.bf16.msra.mxu0 0
  %156 = vmatprep.subr.bf16.mxu0 0
  %157 = vmatpush1.bf16.msra.mxu0 0
  %158 = vmatprep.subr.bf16.mxu0 0
  %159 = vmatpush1.bf16.msra.mxu0 0
  %160 = vmatprep.mubr.bf16.mxu0 0
  %161 = vmatmul.mubr.bf16.gmra.mrb[0].mxu0 %v126
  %v162 = vpop.f32.mrb[0].mxu0
  %v163 = vadd.f32 %v110, %v162
  %v164 = vpop.f32.mrb[0].mxu0
  %v165 = vpop.f32.mrb[0].mxu0
  %v166 = vadd.f32 %v110, %v165
  %v167 = vpop.f32.mrb[0].mxu0
  %168 = vdwg.mxu0
  %169 = vmax.xlane.f32.xlu0 %v163
  %v170 = vpop.xlane.xlu0 %169
  %171 = vmax.xlane.f32.xlu0 %v166
  %v172 = vpop.xlane.xlu0 %171
  %v173 = vsub.f32 %v163, %v170
  %v174 = vsub.f32 %v166, %v172
  %v175 = vmul.f32 %v173, 1.442695
  %v176 = vpow.pop %v175
  %v177 = vmul.f32 %v174, 1.442695
  %v178 = vpow.pop %v177
  %179 = vadd.xlane.f32.xlu0 %v176
  %v180 = vpop.xlane.xlu0 %179
  %181 = vadd.xlane.f32.xlu0 %v178
  %v182 = vpop.xlane.xlu0 %181
  %v183 = vrcp.pop %v180
  %v184 = vmul.f32 %v176, %v183
  %v185 = vrcp.pop %v182
  %v186 = vmul.f32 %v178, %v185
  %187 = vst [vmem:[%s5] sm:$0xff] %v184
  %188 = vst [vmem:[%s5 + $0x8] sm:$0xff] %v186
  // Predicated region
  $region22: #{ffnn_forward.1} parent=0 // pred_check
    _
  $region23: #{ffnn_forward.1} parent=0 // pred_check_branch
    %190 = sbr.rel (0) target = $region25
  $region24: #{ffnn_forward.1} parent=0 // pred_region
    _
  $region25: #{ffnn_forward.1} parent=0 // pred_fallthru
    _
  // Predicated region
  $region26: #{ffnn_forward.1} parent=0 // pred_check
    _
  $region27: #{ffnn_forward.1} parent=0 // pred_check_branch
    %192 = sbr.rel (0) target = $region29
  $region28: #{ffnn_forward.1} parent=0 // pred_region
    _
  $region29: #{ffnn_forward.1} parent=0 // pred_fallthru
    _

</llo_original>
